<compile_context>
chip_gen: v5e
topology: v5e:2x2
jax: 0.10.0
libtpu: 0.0.40
codegen_flags: <defaults>
</compile_context>

<pallas_src>
import functools

import jax
import jax.numpy as jnp
from jax import lax
from jax.experimental import pallas as pl
from jax.experimental.pallas import tpu as pltpu


def _mish_ref(x):
    return x * jnp.tanh(jax.nn.softplus(x))


def _mish_fast(x):
    # mish(x) = x * tanh(softplus(x)); tanh(softplus(x)) = t(t+2)/(t(t+2)+2), t=e^x.
    # 1 exp + 1 approx reciprocal (both EUP) + VPU mul/add.  Large-x lanes (where
    # e^x overflows f32) are selected to 1.0 by the where (tanh(softplus) -> 1).
    t = jnp.exp(x)
    num = t * (t + 2.0)
    r = num * pl.reciprocal(num + 2.0, approx=True)
    return x * jnp.where(x > 20.0, 1.0, r)


def _bottleneck_kernel(x_ref, bn1s_ref, bn1b_ref, w1_ref, b2_ref, w2s_ref,
                       sw1_ref, sb1_ref, sw2t_ref, sb2_ref, o_ref,
                       *, height, width, cin, cg, batch_block):
    """One grid step: `batch_block` images, each a (C, H*W) channel-major slab."""
    hw = height * width
    cout = cin + cg

    # ---- per-lane spatial coords + 3x3 border masks (built once per step) ------
    pos = lax.broadcasted_iota(jnp.int32, (1, hw), 1)
    if (width & (width - 1)) == 0:                      # CIFAR sizes: power of two
        yy = pos >> (width.bit_length() - 1)
        xx = pos & (width - 1)
    else:
        yy = pos // width
        xx = pos % width
    ymask = {-1: yy >= 1, 1: yy <= height - 2}
    xmask = {-1: xx >= 1, 1: xx <= width - 2}
    taps = []                                           # (lane shift, mask) per tap
    for dy in (-1, 0, 1):
        for dx in (-1, 0, 1):
            m = None
            if dy != 0:
                m = ymask[dy]
            if dx != 0:
                m = xmask[dx] if m is None else jnp.logical_and(m, xmask[dx])
            taps.append((dy * width + dx, m))

    # ---- params (hoisted out of the per-image loop) -----------------------------
    bn1s = bn1s_ref[...]                                # (Cin, 1)   f32
    bn1b = bn1b_ref[...]                                # (Cin, 1)   f32
    w1 = w1_ref[...]                                    # (Cint, Cin) bf16, BN2-scaled
    b2 = b2_ref[...]                                    # (Cint, 1)  f32
    w2s = w2s_ref[...]                                  # (9*Cg, Cint) bf16, tap-major
    sw1 = sw1_ref[...]                                  # (Cg, Cr)   f32
    sb1 = sb1_ref[...]                                  # (1, Cr)    f32
    sw2t = sw2t_ref[...]                                # (Cg, Cr)   f32
    sb2 = sb2_ref[...]                                  # (Cg, 1)    f32

    for b in range(batch_block):
        xb = x_ref[b * cin:(b + 1) * cin, :]            # (Cin, HW) act dtype

        # BN1 (folded scale/bias) + Mish, computed in f32.
        a = _mish_fast(xb.astype(jnp.float32) * bn1s + bn1b)

        # 1x1 conv == channel matmul on the MXU (BN2 scale pre-folded into w1).
        h1 = jnp.dot(w1, a.astype(jnp.bfloat16),
                     preferred_element_type=jnp.float32)          # (Cint, HW)
        hb = _mish_fast(h1 + b2).astype(jnp.bfloat16)             # (Cint, HW)

        # 3x3 conv: one stacked matmul, then masked lane shifts of the per-tap
        # (Cg, HW) outputs (shift commutes with the per-pixel channel matmul).
        g_all = jnp.dot(w2s, hb, preferred_element_type=jnp.float32)  # (9*Cg, HW)
        acc = jnp.zeros((cg, hw), jnp.float32)
        for t, (shift, m) in enumerate(taps):
            g = g_all[t * cg:(t + 1) * cg, :]           # sublane slice (aligned if Cg%8==0)
            if shift != 0:
                g = jnp.roll(g, -shift, axis=1)         # tiny (Cg, HW) f32 tile
            if m is not None:
                g = jnp.where(m, g, 0.0)
            acc = acc + g

        # SE block: GAP (lane reduce) -> FC -> ReLU -> FC -> sigmoid (VPU/XLU only).
        gap = jnp.mean(acc, axis=1, keepdims=True)                           # (Cg, 1)
        z = jnp.maximum(jnp.sum(sw1 * gap, axis=0, keepdims=True) + sb1, 0.0)  # (1, Cr)
        s = jax.nn.sigmoid(jnp.sum(sw2t * z, axis=1, keepdims=True) + sb2)     # (Cg, 1)

        # Fused torch.cat([x, out], 1): one full-lane-width store per image.
        o_ref[b * cout:(b + 1) * cout, :] = jnp.concatenate(
            [xb.astype(o_ref.dtype), (acc * s).astype(o_ref.dtype)], axis=0)


def _pick_batch_block(batch, cin, cout):
    """Smallest divisor of `batch` whose (bb*C, HW) blocks satisfy the 8-sublane rule."""
    for bb in range(1, batch + 1):
        if batch % bb == 0 and (bb * cin) % 8 == 0 and (bb * cout) % 8 == 0:
            return bb
    return batch


def bottleneck_forward(x_nchw, params, *, batch_block=None, act_dtype=jnp.bfloat16):
    """Pallas implementation of Bottleneck.forward.  x_nchw: (B, Cin, H, W)."""
    B, Cin, H, W = x_nchw.shape
    HW = H * W
    eps = 1e-5

    # Fold inference-mode BN into per-channel scale/bias (parameter glue).
    s1 = params["g1"] / jnp.sqrt(params["v1"] + eps)
    b1 = params["b1"] - params["m1"] * s1
    s2 = params["g2"] / jnp.sqrt(params["v2"] + eps)
    b2 = params["b2"] - params["m2"] * s2

    # Conv weights -> channel-major matmul layouts; fold BN2 scale into w1.
    w1 = params["w1"][:, :, 0, 0]                        # (Cint, Cin)  (OIHW 1x1)
    Cint = w1.shape[0]
    Cg = params["w2"].shape[0]
    Cout = Cin + Cg
    Cr = params["sw1"].shape[1]
    w1k = (w1 * s2[:, None]).astype(jnp.bfloat16)        # (Cint, Cin) bf16
    w2k = (jnp.transpose(params["w2"], (2, 3, 0, 1))     # (3,3,Cg,Cint)
           .reshape(9 * Cg, Cint).astype(jnp.bfloat16))  # tap-major rows

    # Batch block: keep (bb*C, HW) blocks 8-sublane aligned; per-step footprint
    # stays per-image sized so the "parallel" batch grid has >= 2 steps (megacore).
    bb = _pick_batch_block(B, Cin, Cout) if batch_block is None else batch_block
    assert B % bb == 0, (B, bb)
    assert bb == B or ((bb * Cin) % 8 == 0 and (bb * Cout) % 8 == 0), \
        "batch_block*channels must be a multiple of 8 (sublane rule)"

    # Channel-major views straight from NCHW memory: reshape only, no transposes.
    x_cm = x_nchw.reshape(B * Cin, HW).astype(act_dtype)

    # Explicit VMEM budget: double-buffered I/O blocks + weights + f32 intermediates.
    act_sz = jnp.dtype(act_dtype).itemsize
    blk_io = bb * (Cin + Cout) * HW * act_sz
    inter = bb * HW * (4 * Cin + 6 * Cint + 12 * Cg)
    weights = (Cint * Cin + 9 * Cg * Cint) * 2 + 4 * (2 * Cin + Cint + 3 * Cg + Cr)
    vmem_need = 2 * blk_io + inter + weights + (1 << 20)
    assert vmem_need <= 48 * 2 ** 20, (
        f"per-step VMEM footprint ~{vmem_need >> 20} MiB; use a smaller batch_block")
    vmem_limit = int(min(64 * 2 ** 20, max(32 * 2 ** 20, 2 * vmem_need)))

    kernel = functools.partial(_bottleneck_kernel, height=H, width=W,
                               cin=Cin, cg=Cg, batch_block=bb)

    out_cm = pl.pallas_call(
        kernel,
        out_shape=jax.ShapeDtypeStruct((B * Cout, HW), act_dtype),
        grid=(B // bb,),
        in_specs=[
            pl.BlockSpec((bb * Cin, HW), lambda i: (i, 0)),      # x (channel-major)
            pl.BlockSpec((Cin, 1), lambda i: (0, 0)),            # bn1 scale
            pl.BlockSpec((Cin, 1), lambda i: (0, 0)),            # bn1 bias
            pl.BlockSpec((Cint, Cin), lambda i: (0, 0)),         # w1 (BN2-scaled)
            pl.BlockSpec((Cint, 1), lambda i: (0, 0)),           # bn2 bias
            pl.BlockSpec((9 * Cg, Cint), lambda i: (0, 0)),      # w2 taps (stacked)
            pl.BlockSpec((Cg, Cr), lambda i: (0, 0)),            # SE fc1 weight
            pl.BlockSpec((1, Cr), lambda i: (0, 0)),             # SE fc1 bias
            pl.BlockSpec((Cg, Cr), lambda i: (0, 0)),            # SE fc2 weight^T
            pl.BlockSpec((Cg, 1), lambda i: (0, 0)),             # SE fc2 bias
        ],
        out_specs=pl.BlockSpec((bb * Cout, HW), lambda i: (i, 0)),
        compiler_params=pltpu.CompilerParams(
            dimension_semantics=("parallel",),
            vmem_limit_bytes=vmem_limit),
    )(
        x_cm,
        s1.reshape(Cin, 1), b1.reshape(Cin, 1),
        w1k,
        b2.reshape(Cint, 1),
        w2k,
        params["sw1"],                     # (Cg, Cr)
        params["sb1"].reshape(1, Cr),      # (1, Cr)
        params["sw2"].T,                   # (Cg, Cr)
        params["sb2"].reshape(Cg, 1),      # (Cg, 1)
    )

    # Concat already fused in-kernel; only a free reshape back to NCHW remains.
    return out_cm.reshape(B, Cout, H, W)


def reference_forward(x, p):
    """Pure-JAX/XLA reference (inference-mode BN), for correctness checking."""
    eps = 1e-5

    def bn(t, g, b, m, v):
        return (t - m[None, :, None, None]) / jnp.sqrt(v[None, :, None, None] + eps) \
            * g[None, :, None, None] + b[None, :, None, None]

    h = _mish_ref(bn(x, p["g1"], p["b1"], p["m1"], p["v1"]))
    h = lax.conv_general_dilated(h, p["w1"], (1, 1), "VALID",
                                 dimension_numbers=("NCHW", "OIHW", "NCHW"))
    h = _mish_ref(bn(h, p["g2"], p["b2"], p["m2"], p["v2"]))
    h = lax.conv_general_dilated(h, p["w2"], (1, 1), ((1, 1), (1, 1)),
                                 dimension_numbers=("NCHW", "OIHW", "NCHW"))
    y = jnp.mean(h, axis=(2, 3))
    y = jnp.maximum(y @ p["sw1"] + p["sb1"], 0.0)
    y = jax.nn.sigmoid(y @ p["sw2"] + p["sb2"])
    h = h * y[:, :, None, None]
    return jnp.concatenate([x, h], axis=1)


def make_params(key, in_channels, growth_rate, reduction=8):
    inter = 4 * growth_rate
    red = max(growth_rate // reduction, 1)
    ks = jax.random.split(key, 16)
    u = lambda k, s: jax.random.uniform(k, s, jnp.float32, 0.5, 1.5)
    n = lambda k, s, sc: sc * jax.random.normal(k, s, jnp.float32)
    return {
        "g1": u(ks[0], (in_channels,)), "b1": n(ks[1], (in_channels,), 0.1),
        "m1": n(ks[2], (in_channels,), 0.1), "v1": u(ks[3], (in_channels,)),
        "w1": n(ks[4], (inter, in_channels, 1, 1), 0.2),
        "g2": u(ks[5], (inter,)), "b2": n(ks[6], (inter,), 0.1),
        "m2": n(ks[7], (inter,), 0.1), "v2": u(ks[8], (inter,)),
        "w2": n(ks[9], (growth_rate, inter, 3, 3), 0.1),
        "sw1": n(ks[10], (growth_rate, red), 0.3), "sb1": n(ks[11], (red,), 0.1),
        "sw2": n(ks[12], (red, growth_rate), 0.3), "sb2": n(ks[13], (growth_rate,), 0.1),
    }


if __name__ == "__main__":
    B, Cin, H, W = 2, 16, 8, 8
    growth_rate = 8

    key = jax.random.PRNGKey(0)
    kx, kp = jax.random.split(key)
    x = jax.random.normal(kx, (B, Cin, H, W), jnp.float32)
    params = make_params(kp, Cin, growth_rate)

    out = jax.block_until_ready(bottleneck_forward(x, params))
    ref = jax.block_until_ready(reference_forward(x, params))

    assert out.shape == (B, Cin + growth_rate, H, W), out.shape
    # bf16 activation I/O + bf16 MXU operands + approx-reciprocal Mish vs the f32
    # XLA reference -> relaxed tolerance (inference-grade numerics).
    out_f32 = out.astype(jnp.float32)
    max_err = float(jnp.max(jnp.abs(out_f32 - ref)))
    assert jnp.allclose(out_f32, ref, rtol=5e-2, atol=5e-2), max_err
    print("KERNEL_OK")
</pallas_src>

<mosaic_0001>
module attributes {stable_mosaic.version = 11 : i64} {
  func.func @_bottleneck_kernel(%arg0: i32, %arg1: memref<16x64xbf16, #tpu.memory_space<vmem>>, %arg2: memref<16x1xf32, #tpu.memory_space<vmem>>, %arg3: memref<16x1xf32, #tpu.memory_space<vmem>>, %arg4: memref<32x16xbf16, #tpu.memory_space<vmem>>, %arg5: memref<32x1xf32, #tpu.memory_space<vmem>>, %arg6: memref<72x32xbf16, #tpu.memory_space<vmem>>, %arg7: memref<8x1xf32, #tpu.memory_space<vmem>>, %arg8: memref<1x1xf32, #tpu.memory_space<vmem>>, %arg9: memref<8x1xf32, #tpu.memory_space<vmem>>, %arg10: memref<8x1xf32, #tpu.memory_space<vmem>>, %arg11: memref<24x64xbf16, #tpu.memory_space<vmem>>) attributes {dimension_semantics = [#tpu.dimension_semantics<parallel>], iteration_bounds = array<i64: 2>, scalar_prefetch = 0 : i64, scratch_operands = 0 : i64, tpu.core_type = #tpu.core_type<tc>, window_params = [{transform_indices = @transform_0, window_bounds = array<i64: 16, 64>}, {pipeline_mode = #tpu.pipeline_mode<synchronous>, transform_indices = @transform_1, window_bounds = array<i64: 16, 1>}, {pipeline_mode = #tpu.pipeline_mode<synchronous>, transform_indices = @transform_2, window_bounds = array<i64: 16, 1>}, {pipeline_mode = #tpu.pipeline_mode<synchronous>, transform_indices = @transform_3, window_bounds = array<i64: 32, 16>}, {pipeline_mode = #tpu.pipeline_mode<synchronous>, transform_indices = @transform_4, window_bounds = array<i64: 32, 1>}, {pipeline_mode = #tpu.pipeline_mode<synchronous>, transform_indices = @transform_5, window_bounds = array<i64: 72, 32>}, {pipeline_mode = #tpu.pipeline_mode<synchronous>, transform_indices = @transform_6, window_bounds = array<i64: 8, 1>}, {pipeline_mode = #tpu.pipeline_mode<synchronous>, transform_indices = @transform_7, window_bounds = array<i64: 1, 1>}, {pipeline_mode = #tpu.pipeline_mode<synchronous>, transform_indices = @transform_8, window_bounds = array<i64: 8, 1>}, {pipeline_mode = #tpu.pipeline_mode<synchronous>, transform_indices = @transform_9, window_bounds = array<i64: 8, 1>}, {transform_indices = @transform_10, window_bounds = array<i64: 24, 64>}]} {
    %0 = tpu.iota {dimensions = array<i32: 1>} : vector<1x64xi32>
    %c3_i32 = arith.constant 3 : i32
    %1 = vector.broadcast %c3_i32 : i32 to vector<1x64xi32>
    %2 = arith.shrsi %0, %1 : vector<1x64xi32>
    %c7_i32 = arith.constant 7 : i32
    %3 = vector.broadcast %c7_i32 : i32 to vector<1x64xi32>
    %4 = arith.andi %0, %3 : vector<1x64xi32>
    %c1_i32 = arith.constant 1 : i32
    %5 = vector.broadcast %c1_i32 : i32 to vector<1x64xi32>
    %6 = arith.cmpi sge, %2, %5 : vector<1x64xi32>
    %c6_i32 = arith.constant 6 : i32
    %7 = vector.broadcast %c6_i32 : i32 to vector<1x64xi32>
    %8 = arith.cmpi sle, %2, %7 : vector<1x64xi32>
    %c1_i32_0 = arith.constant 1 : i32
    %9 = vector.broadcast %c1_i32_0 : i32 to vector<1x64xi32>
    %10 = arith.cmpi sge, %4, %9 : vector<1x64xi32>
    %c6_i32_1 = arith.constant 6 : i32
    %11 = vector.broadcast %c6_i32_1 : i32 to vector<1x64xi32>
    %12 = arith.cmpi sle, %4, %11 : vector<1x64xi32>
    %13 = arith.andi %6, %10 : vector<1x64xi1>
    %14 = arith.andi %6, %12 : vector<1x64xi1>
    %15 = arith.andi %8, %10 : vector<1x64xi1>
    %16 = arith.andi %8, %12 : vector<1x64xi1>
    %c0 = arith.constant 0 : index
    %c0_2 = arith.constant 0 : index
    %17 = vector.load %arg2[%c0, %c0_2] : memref<16x1xf32, #tpu.memory_space<vmem>>, vector<16x1xf32>
    %c0_3 = arith.constant 0 : index
    %c0_4 = arith.constant 0 : index
    %18 = vector.load %arg3[%c0_3, %c0_4] : memref<16x1xf32, #tpu.memory_space<vmem>>, vector<16x1xf32>
    %c0_5 = arith.constant 0 : index
    %c0_6 = arith.constant 0 : index
    %19 = vector.load %arg4[%c0_5, %c0_6] : memref<32x16xbf16, #tpu.memory_space<vmem>>, vector<32x16xbf16>
    %c0_7 = arith.constant 0 : index
    %c0_8 = arith.constant 0 : index
    %20 = vector.load %arg5[%c0_7, %c0_8] : memref<32x1xf32, #tpu.memory_space<vmem>>, vector<32x1xf32>
    %c0_9 = arith.constant 0 : index
    %c0_10 = arith.constant 0 : index
    %21 = vector.load %arg6[%c0_9, %c0_10] : memref<72x32xbf16, #tpu.memory_space<vmem>>, vector<72x32xbf16>
    %c0_11 = arith.constant 0 : index
    %c0_12 = arith.constant 0 : index
    %22 = vector.load %arg7[%c0_11, %c0_12] : memref<8x1xf32, #tpu.memory_space<vmem>>, vector<8x1xf32>
    %c0_13 = arith.constant 0 : index
    %c0_14 = arith.constant 0 : index
    %23 = vector.load %arg8[%c0_13, %c0_14] : memref<1x1xf32, #tpu.memory_space<vmem>>, vector<1x1xf32>
    %c0_15 = arith.constant 0 : index
    %c0_16 = arith.constant 0 : index
    %24 = vector.load %arg9[%c0_15, %c0_16] : memref<8x1xf32, #tpu.memory_space<vmem>>, vector<8x1xf32>
    %c0_17 = arith.constant 0 : index
    %c0_18 = arith.constant 0 : index
    %25 = vector.load %arg10[%c0_17, %c0_18] : memref<8x1xf32, #tpu.memory_space<vmem>>, vector<8x1xf32>
    %c0_19 = arith.constant 0 : index
    %c0_20 = arith.constant 0 : index
    %26 = vector.load %arg1[%c0_19, %c0_20] : memref<16x64xbf16, #tpu.memory_space<vmem>>, vector<16x64xbf16>
    %27 = arith.extf %26 : vector<16x64xbf16> to vector<16x64xf32>
    %28 = vector.broadcast %17 : vector<16x1xf32> to vector<16x64xf32>
    %29 = arith.mulf %27, %28 : vector<16x64xf32>
    %30 = vector.broadcast %18 : vector<16x1xf32> to vector<16x64xf32>
    %31 = arith.addf %29, %30 : vector<16x64xf32>
    %32 = math.exp %31 : vector<16x64xf32>
    %cst = arith.constant 2.000000e+00 : f32
    %33 = vector.broadcast %cst : f32 to vector<16x64xf32>
    %34 = arith.addf %32, %33 : vector<16x64xf32>
    %35 = arith.mulf %32, %34 : vector<16x64xf32>
    %cst_21 = arith.constant 2.000000e+00 : f32
    %36 = vector.broadcast %cst_21 : f32 to vector<16x64xf32>
    %37 = arith.addf %35, %36 : vector<16x64xf32>
    %38 = tpu.reciprocal %37 {approx = true} : vector<16x64xf32> -> vector<16x64xf32>
    %39 = arith.mulf %35, %38 : vector<16x64xf32>
    %cst_22 = arith.constant 2.000000e+01 : f32
    %40 = vector.broadcast %cst_22 : f32 to vector<16x64xf32>
    %41 = arith.cmpf ogt, %31, %40 : vector<16x64xf32>
    %cst_23 = arith.constant 1.000000e+00 : f32
    %42 = vector.broadcast %cst_23 : f32 to vector<16x64xf32>
    %43 = arith.select %41, %42, %39 : vector<16x64xi1>, vector<16x64xf32>
    %44 = arith.mulf %31, %43 : vector<16x64xf32>
    %45 = arith.truncf %44 : vector<16x64xf32> to vector<16x64xbf16>
    %cst_24 = arith.constant dense<0.000000e+00> : vector<32x64xf32>
    %46 = tpu.matmul %19, %45, %cst_24 {dimension_numbers = #tpu.dot_dimension_numbers<[1], [0], [0], [1], [0, 0, 1, 1], [], []>} : vector<32x16xbf16>, vector<16x64xbf16>, vector<32x64xf32> -> vector<32x64xf32>
    %47 = vector.broadcast %20 : vector<32x1xf32> to vector<32x64xf32>
    %48 = arith.addf %46, %47 : vector<32x64xf32>
    %49 = math.exp %48 : vector<32x64xf32>
    %cst_25 = arith.constant 2.000000e+00 : f32
    %50 = vector.broadcast %cst_25 : f32 to vector<32x64xf32>
    %51 = arith.addf %49, %50 : vector<32x64xf32>
    %52 = arith.mulf %49, %51 : vector<32x64xf32>
    %cst_26 = arith.constant 2.000000e+00 : f32
    %53 = vector.broadcast %cst_26 : f32 to vector<32x64xf32>
    %54 = arith.addf %52, %53 : vector<32x64xf32>
    %55 = tpu.reciprocal %54 {approx = true} : vector<32x64xf32> -> vector<32x64xf32>
    %56 = arith.mulf %52, %55 : vector<32x64xf32>
    %cst_27 = arith.constant 2.000000e+01 : f32
    %57 = vector.broadcast %cst_27 : f32 to vector<32x64xf32>
    %58 = arith.cmpf ogt, %48, %57 : vector<32x64xf32>
    %cst_28 = arith.constant 1.000000e+00 : f32
    %59 = vector.broadcast %cst_28 : f32 to vector<32x64xf32>
    %60 = arith.select %58, %59, %56 : vector<32x64xi1>, vector<32x64xf32>
    %61 = arith.mulf %48, %60 : vector<32x64xf32>
    %62 = arith.truncf %61 : vector<32x64xf32> to vector<32x64xbf16>
    %cst_29 = arith.constant dense<0.000000e+00> : vector<72x64xf32>
    %63 = tpu.matmul %21, %62, %cst_29 {dimension_numbers = #tpu.dot_dimension_numbers<[1], [0], [0], [1], [0, 0, 1, 1], [], []>} : vector<72x32xbf16>, vector<32x64xbf16>, vector<72x64xf32> -> vector<72x64xf32>
    %cst_30 = arith.constant 0.000000e+00 : f32
    %64 = vector.broadcast %cst_30 : f32 to vector<8x64xf32>
    %65 = vector.extract_strided_slice %63 {offsets = [0, 0], sizes = [8, 64], strides = [1, 1]} : vector<72x64xf32> to vector<8x64xf32>
    %66 = vector.extract_strided_slice %65 {offsets = [0, 55], sizes = [8, 9], strides = [1, 1]} : vector<8x64xf32> to vector<8x9xf32>
    %67 = vector.extract_strided_slice %65 {offsets = [0, 0], sizes = [8, 55], strides = [1, 1]} : vector<8x64xf32> to vector<8x55xf32>
    %68 = tpu.concatenate %66, %67 in 1 : vector<8x9xf32>, vector<8x55xf32> -> vector<8x64xf32>
    %cst_31 = arith.constant 0.000000e+00 : f32
    %69 = vector.shape_cast %13 : vector<1x64xi1> to vector<1x64xi1>
    %70 = vector.broadcast %69 : vector<1x64xi1> to vector<8x64xi1>
    %71 = vector.broadcast %cst_31 : f32 to vector<8x64xf32>
    %72 = arith.select %70, %68, %71 : vector<8x64xi1>, vector<8x64xf32>
    %73 = arith.addf %64, %72 : vector<8x64xf32>
    %74 = vector.extract_strided_slice %63 {offsets = [8, 0], sizes = [8, 64], strides = [1, 1]} : vector<72x64xf32> to vector<8x64xf32>
    %75 = vector.extract_strided_slice %74 {offsets = [0, 56], sizes = [8, 8], strides = [1, 1]} : vector<8x64xf32> to vector<8x8xf32>
    %76 = vector.extract_strided_slice %74 {offsets = [0, 0], sizes = [8, 56], strides = [1, 1]} : vector<8x64xf32> to vector<8x56xf32>
    %77 = tpu.concatenate %75, %76 in 1 : vector<8x8xf32>, vector<8x56xf32> -> vector<8x64xf32>
    %cst_32 = arith.constant 0.000000e+00 : f32
    %78 = vector.shape_cast %6 : vector<1x64xi1> to vector<1x64xi1>
    %79 = vector.broadcast %78 : vector<1x64xi1> to vector<8x64xi1>
    %80 = vector.broadcast %cst_32 : f32 to vector<8x64xf32>
    %81 = arith.select %79, %77, %80 : vector<8x64xi1>, vector<8x64xf32>
    %82 = arith.addf %73, %81 : vector<8x64xf32>
    %83 = vector.extract_strided_slice %63 {offsets = [16, 0], sizes = [8, 64], strides = [1, 1]} : vector<72x64xf32> to vector<8x64xf32>
    %84 = vector.extract_strided_slice %83 {offsets = [0, 57], sizes = [8, 7], strides = [1, 1]} : vector<8x64xf32> to vector<8x7xf32>
    %85 = vector.extract_strided_slice %83 {offsets = [0, 0], sizes = [8, 57], strides = [1, 1]} : vector<8x64xf32> to vector<8x57xf32>
    %86 = tpu.concatenate %84, %85 in 1 : vector<8x7xf32>, vector<8x57xf32> -> vector<8x64xf32>
    %cst_33 = arith.constant 0.000000e+00 : f32
    %87 = vector.shape_cast %14 : vector<1x64xi1> to vector<1x64xi1>
    %88 = vector.broadcast %87 : vector<1x64xi1> to vector<8x64xi1>
    %89 = vector.broadcast %cst_33 : f32 to vector<8x64xf32>
    %90 = arith.select %88, %86, %89 : vector<8x64xi1>, vector<8x64xf32>
    %91 = arith.addf %82, %90 : vector<8x64xf32>
    %92 = vector.extract_strided_slice %63 {offsets = [24, 0], sizes = [8, 64], strides = [1, 1]} : vector<72x64xf32> to vector<8x64xf32>
    %93 = vector.extract_strided_slice %92 {offsets = [0, 63], sizes = [8, 1], strides = [1, 1]} : vector<8x64xf32> to vector<8x1xf32>
    %94 = vector.extract_strided_slice %92 {offsets = [0, 0], sizes = [8, 63], strides = [1, 1]} : vector<8x64xf32> to vector<8x63xf32>
    %95 = tpu.concatenate %93, %94 in 1 : vector<8x1xf32>, vector<8x63xf32> -> vector<8x64xf32>
    %cst_34 = arith.constant 0.000000e+00 : f32
    %96 = vector.shape_cast %10 : vector<1x64xi1> to vector<1x64xi1>
    %97 = vector.broadcast %96 : vector<1x64xi1> to vector<8x64xi1>
    %98 = vector.broadcast %cst_34 : f32 to vector<8x64xf32>
    %99 = arith.select %97, %95, %98 : vector<8x64xi1>, vector<8x64xf32>
    %100 = arith.addf %91, %99 : vector<8x64xf32>
    %101 = vector.extract_strided_slice %63 {offsets = [32, 0], sizes = [8, 64], strides = [1, 1]} : vector<72x64xf32> to vector<8x64xf32>
    %102 = arith.addf %100, %101 : vector<8x64xf32>
    %103 = vector.extract_strided_slice %63 {offsets = [40, 0], sizes = [8, 64], strides = [1, 1]} : vector<72x64xf32> to vector<8x64xf32>
    %104 = vector.extract_strided_slice %103 {offsets = [0, 1], sizes = [8, 63], strides = [1, 1]} : vector<8x64xf32> to vector<8x63xf32>
    %105 = vector.extract_strided_slice %103 {offsets = [0, 0], sizes = [8, 1], strides = [1, 1]} : vector<8x64xf32> to vector<8x1xf32>
    %106 = tpu.concatenate %104, %105 in 1 : vector<8x63xf32>, vector<8x1xf32> -> vector<8x64xf32>
    %cst_35 = arith.constant 0.000000e+00 : f32
    %107 = vector.shape_cast %12 : vector<1x64xi1> to vector<1x64xi1>
    %108 = vector.broadcast %107 : vector<1x64xi1> to vector<8x64xi1>
    %109 = vector.broadcast %cst_35 : f32 to vector<8x64xf32>
    %110 = arith.select %108, %106, %109 : vector<8x64xi1>, vector<8x64xf32>
    %111 = arith.addf %102, %110 : vector<8x64xf32>
    %112 = vector.extract_strided_slice %63 {offsets = [48, 0], sizes = [8, 64], strides = [1, 1]} : vector<72x64xf32> to vector<8x64xf32>
    %113 = vector.extract_strided_slice %112 {offsets = [0, 7], sizes = [8, 57], strides = [1, 1]} : vector<8x64xf32> to vector<8x57xf32>
    %114 = vector.extract_strided_slice %112 {offsets = [0, 0], sizes = [8, 7], strides = [1, 1]} : vector<8x64xf32> to vector<8x7xf32>
    %115 = tpu.concatenate %113, %114 in 1 : vector<8x57xf32>, vector<8x7xf32> -> vector<8x64xf32>
    %cst_36 = arith.constant 0.000000e+00 : f32
    %116 = vector.shape_cast %15 : vector<1x64xi1> to vector<1x64xi1>
    %117 = vector.broadcast %116 : vector<1x64xi1> to vector<8x64xi1>
    %118 = vector.broadcast %cst_36 : f32 to vector<8x64xf32>
    %119 = arith.select %117, %115, %118 : vector<8x64xi1>, vector<8x64xf32>
    %120 = arith.addf %111, %119 : vector<8x64xf32>
    %121 = vector.extract_strided_slice %63 {offsets = [56, 0], sizes = [8, 64], strides = [1, 1]} : vector<72x64xf32> to vector<8x64xf32>
    %122 = vector.extract_strided_slice %121 {offsets = [0, 8], sizes = [8, 56], strides = [1, 1]} : vector<8x64xf32> to vector<8x56xf32>
    %123 = vector.extract_strided_slice %121 {offsets = [0, 0], sizes = [8, 8], strides = [1, 1]} : vector<8x64xf32> to vector<8x8xf32>
    %124 = tpu.concatenate %122, %123 in 1 : vector<8x56xf32>, vector<8x8xf32> -> vector<8x64xf32>
    %cst_37 = arith.constant 0.000000e+00 : f32
    %125 = vector.shape_cast %8 : vector<1x64xi1> to vector<1x64xi1>
    %126 = vector.broadcast %125 : vector<1x64xi1> to vector<8x64xi1>
    %127 = vector.broadcast %cst_37 : f32 to vector<8x64xf32>
    %128 = arith.select %126, %124, %127 : vector<8x64xi1>, vector<8x64xf32>
    %129 = arith.addf %120, %128 : vector<8x64xf32>
    %130 = vector.extract_strided_slice %63 {offsets = [64, 0], sizes = [8, 64], strides = [1, 1]} : vector<72x64xf32> to vector<8x64xf32>
    %131 = vector.extract_strided_slice %130 {offsets = [0, 9], sizes = [8, 55], strides = [1, 1]} : vector<8x64xf32> to vector<8x55xf32>
    %132 = vector.extract_strided_slice %130 {offsets = [0, 0], sizes = [8, 9], strides = [1, 1]} : vector<8x64xf32> to vector<8x9xf32>
    %133 = tpu.concatenate %131, %132 in 1 : vector<8x55xf32>, vector<8x9xf32> -> vector<8x64xf32>
    %cst_38 = arith.constant 0.000000e+00 : f32
    %134 = vector.shape_cast %16 : vector<1x64xi1> to vector<1x64xi1>
    %135 = vector.broadcast %134 : vector<1x64xi1> to vector<8x64xi1>
    %136 = vector.broadcast %cst_38 : f32 to vector<8x64xf32>
    %137 = arith.select %135, %133, %136 : vector<8x64xi1>, vector<8x64xf32>
    %138 = arith.addf %129, %137 : vector<8x64xf32>
    %cst_39 = arith.constant dense<0.000000e+00> : vector<8xf32>
    %139 = vector.multi_reduction <add>, %138, %cst_39 [1] : vector<8x64xf32> to vector<8xf32>
    %140 = vector.shape_cast %139 : vector<8xf32> to vector<8x1xf32>
    %cst_40 = arith.constant 6.400000e+01 : f32
    %141 = vector.broadcast %cst_40 : f32 to vector<8x1xf32>
    %142 = arith.divf %140, %141 : vector<8x1xf32>
    %143 = arith.mulf %22, %142 : vector<8x1xf32>
    %cst_41 = arith.constant dense<0.000000e+00> : vector<1xf32>
    %144 = vector.multi_reduction <add>, %143, %cst_41 [0] : vector<8x1xf32> to vector<1xf32>
    %145 = vector.shape_cast %144 : vector<1xf32> to vector<1x1xf32>
    %146 = arith.addf %145, %23 : vector<1x1xf32>
    %cst_42 = arith.constant 0.000000e+00 : f32
    %147 = vector.broadcast %cst_42 : f32 to vector<1x1xf32>
    %148 = arith.maximumf %146, %147 : vector<1x1xf32>
    %149 = vector.broadcast %148 : vector<1x1xf32> to vector<8x1xf32>
    %150 = arith.mulf %24, %149 : vector<8x1xf32>
    %cst_43 = arith.constant dense<0.000000e+00> : vector<8xf32>
    %151 = vector.multi_reduction <add>, %150, %cst_43 [1] : vector<8x1xf32> to vector<8xf32>
    %152 = vector.shape_cast %151 : vector<8xf32> to vector<8x1xf32>
    %153 = arith.addf %152, %25 : vector<8x1xf32>
    %154 = arith.negf %153 : vector<8x1xf32>
    %155 = math.exp %154 : vector<8x1xf32>
    %cst_44 = arith.constant 1.000000e+00 : f32
    %156 = vector.broadcast %cst_44 : f32 to vector<8x1xf32>
    %157 = arith.addf %156, %155 : vector<8x1xf32>
    %158 = arith.divf %156, %157 : vector<8x1xf32>
    %159 = vector.broadcast %158 : vector<8x1xf32> to vector<8x64xf32>
    %160 = arith.mulf %138, %159 : vector<8x64xf32>
    %161 = arith.truncf %160 : vector<8x64xf32> to vector<8x64xbf16>
    %162 = tpu.concatenate %26, %161 in 0 : vector<16x64xbf16>, vector<8x64xbf16> -> vector<24x64xbf16>
    %c0_45 = arith.constant 0 : index
    %c0_46 = arith.constant 0 : index
    %163 = vector.load %arg11[%c0_45, %c0_46] : memref<24x64xbf16, #tpu.memory_space<vmem>>, vector<24x64xbf16>
    tpu.vector_store %arg11[%c0_45, %c0_46], %162 {strides = array<i32>} : memref<24x64xbf16, #tpu.memory_space<vmem>>, vector<24x64xbf16>,
    return
  }
  func.func @transform_0(%arg0: i32) -> (i32, i32) {
    %c0_i32 = arith.constant 0 : i32
    %c0_i32_0 = arith.constant 0 : i32
    return %arg0, %c0_i32 : i32, i32
  }
  func.func @transform_1(%arg0: i32) -> (i32, i32) {
    %c0_i32 = arith.constant 0 : i32
    %c0_i32_0 = arith.constant 0 : i32
    %c0_i32_1 = arith.constant 0 : i32
    return %c0_i32, %c0_i32_0 : i32, i32
  }
  func.func @transform_2(%arg0: i32) -> (i32, i32) {
    %c0_i32 = arith.constant 0 : i32
    %c0_i32_0 = arith.constant 0 : i32
    %c0_i32_1 = arith.constant 0 : i32
    return %c0_i32, %c0_i32_0 : i32, i32
  }
  func.func @transform_3(%arg0: i32) -> (i32, i32) {
    %c0_i32 = arith.constant 0 : i32
    %c0_i32_0 = arith.constant 0 : i32
    %c0_i32_1 = arith.constant 0 : i32
    return %c0_i32, %c0_i32_0 : i32, i32
  }
  func.func @transform_4(%arg0: i32) -> (i32, i32) {
    %c0_i32 = arith.constant 0 : i32
    %c0_i32_0 = arith.constant 0 : i32
    %c0_i32_1 = arith.constant 0 : i32
    return %c0_i32, %c0_i32_0 : i32, i32
  }
  func.func @transform_5(%arg0: i32) -> (i32, i32) {
    %c0_i32 = arith.constant 0 : i32
    %c0_i32_0 = arith.constant 0 : i32
    %c0_i32_1 = arith.constant 0 : i32
    return %c0_i32, %c0_i32_0 : i32, i32
  }
  func.func @transform_6(%arg0: i32) -> (i32, i32) {
    %c0_i32 = arith.constant 0 : i32
    %c0_i32_0 = arith.constant 0 : i32
    %c0_i32_1 = arith.constant 0 : i32
    return %c0_i32, %c0_i32_0 : i32, i32
  }
  func.func @transform_7(%arg0: i32) -> (i32, i32) {
    %c0_i32 = arith.constant 0 : i32
    %c0_i32_0 = arith.constant 0 : i32
    %c0_i32_1 = arith.constant 0 : i32
    return %c0_i32, %c0_i32_0 : i32, i32
  }
  func.func @transform_8(%arg0: i32) -> (i32, i32) {
    %c0_i32 = arith.constant 0 : i32
    %c0_i32_0 = arith.constant 0 : i32
    %c0_i32_1 = arith.constant 0 : i32
    return %c0_i32, %c0_i32_0 : i32, i32
  }
  func.func @transform_9(%arg0: i32) -> (i32, i32) {
    %c0_i32 = arith.constant 0 : i32
    %c0_i32_0 = arith.constant 0 : i32
    %c0_i32_1 = arith.constant 0 : i32
    return %c0_i32, %c0_i32_0 : i32, i32
  }
  func.func @transform_10(%arg0: i32) -> (i32, i32) {
    %c0_i32 = arith.constant 0 : i32
    %c0_i32_0 = arith.constant 0 : i32
    return %arg0, %c0_i32 : i32, i32
  }
}

</mosaic_0001>

<llo_original>
// kernel: tpu_custom_call.1
$region0: #{tpu_custom_call.1}
  #allocation0 [shape = 'u32[]', space=smem, size = 0x4, offset = 0x4, fixed_abs, tag = 'smem constant byte address 0x4 - core index']
  #allocation1 [shape = 'u32[72,128]{1,0:T(1,128)}', space=vmem, size = 0x9000, scoped, tag = 'internal scratch']
  #allocation2 [shape = 'f32[1,1]{1,0:T(1,128)S(1)}', space=vmem, size = 0x200, scoped, tag = 'scoped memory for tpu_custom_call.1']
  %s0 = inlined_call_operand.vmem [shape: bf16[32,64], index: 0, kind: input, shape index: {}]
  %s1 = inlined_call_operand.vmem [shape: f32[16,1], index: 1, kind: input, shape index: {}]
  %s2 = inlined_call_operand.vmem [shape: f32[16,1], index: 2, kind: input, shape index: {}]
  %s3 = inlined_call_operand.vmem [shape: bf16[32,16], index: 3, kind: input, shape index: {}]
  %s4 = inlined_call_operand.vmem [shape: f32[32,1], index: 4, kind: input, shape index: {}]
  %s5 = inlined_call_operand.vmem [shape: bf16[72,32], index: 5, kind: input, shape index: {}]
  %s6 = inlined_call_operand.vmem [shape: f32[8,1], index: 6, kind: input, shape index: {}]
  %s7 = inlined_call_operand.<no memory space> [shape: f32[1,1], index: 7, kind: input, shape index: {}]
  %s8 = inlined_call_operand.vmem [shape: f32[8,1], index: 8, kind: input, shape index: {}]
  %s9 = inlined_call_operand.vmem [shape: f32[8,1], index: 9, kind: input, shape index: {}]
  %s10 = inlined_call_operand.hbm [shape: bf16[48,64], index: 10, kind: output, shape index: {}]
  %s11 = sld [smem:[#allocation0]]
  $region73: #{tpu_custom_call.1} parent=0
    _
  %s13 = ssub.s32 1, %s11
  %s14 = scalar_select 0, %s13, %s11
  %v15 = vstv %s7
  %16 = vst [vmem:[#allocation2] sm:$0x1] %v15
  $region1: #{tpu_custom_call.1} parent=0
    #allocation3 [shape = 'u8[12288]{0}', space=vmem, size = 0x3000, scoped, tag = 'output window, operand 0']
    #allocation4 [shape = 's32[2]{0}', space=sflag, size = 0x8, scoped, tag = 'scoped memory for tpu_custom_call.1']
    %17 = vsyncpa [#allocation4], 0
    %s18 = scalar_lea.sflag [#allocation4], 1
    %19 = vsyncpa %s18, 0
    loop: start=0, step=1, limit=4
    $region2: #{tpu_custom_call.1} parent=1 // loop_pre_header
      _
    $region3: #{tpu_custom_call.1} parent=1 // loop_header
      %s21 = sphi 0, %s25
      %p22 = scmp.ge.s32.totalorder %s21, 4
      %s31 = sphi 0, %s33
      %s34 = sphi 0, %s31
      %s35 = sphi 0, %s34
      %s51 = sphi 0, %s35
      %s55 = sphi 0, %s55
      %s57 = sphi 0, %s55
      %s58 = sphi 0, %s57
      %s72 = sphi 0, %s58
      %s76 = sphi 0, %s76
      %s78 = sphi 0, %s76
      %s79 = sphi 0, %s78
      %s93 = sphi 0, %s79
      %s97 = sphi 0, %s97
      %s99 = sphi 0, %s97
      %s100 = sphi 0, %s99
      %s114 = sphi 0, %s100
      %s118 = sphi 0, %s118
      %s120 = sphi 0, %s118
      %s121 = sphi 0, %s120
      %s135 = sphi 0, %s121
      %s139 = sphi 0, %s139
      %s141 = sphi 0, %s139
      %s142 = sphi 0, %s141
      %s156 = sphi 0, %s142
      %s160 = sphi 0, %s160
      %s162 = sphi 0, %s160
      %s163 = sphi 0, %s162
      %s177 = sphi 0, %s163
      %s181 = sphi 0, %s181
      %s183 = sphi 0, %s181
      %s184 = sphi 0, %s183
      %s198 = sphi 0, %s184
      %s202 = sphi 0, %s202
      %s204 = sphi 0, %s202
      %s205 = sphi 0, %s204
      %s219 = sphi 0, %s205
      %s223 = sphi 0, %s223
      %s225 = sphi 0, %s223
      %s226 = sphi 0, %s225
      %s240 = sphi 0, %s226
      %s246 = sphi 0, %s248
      %s249 = sphi 0, %s246
      %s250 = sphi 0, %s249
      %s266 = sphi 0, %s250
    $region4: #{tpu_custom_call.1} parent=1 // loop_header_branch
      %24 = sbr.rel (%p22) target = $region8
    $region5: #{tpu_custom_call.1} parent=1 // loop_body
      %s26 = ssub.s32 %s21, 1
      %s27 = ssub.s32 %s21, 2
      %s28 = sadd.s32 %s21, 1
      %s29 = ssub.s32 %s21, %s28
      %p30 = scmp.eq.s32.totalorder %s29, 0
      %s32 = sadd.s32 %s31, 1
      %s33 = scalar_select %p30, %s31, %s32
      %p36 = pneg %p30
      %p37 = scmp.eq.s32.totalorder %s21, 1
      %p38 = por %p36, %p37
      %p39 = scmp.ne.s32.totalorder %s31, %s34
      %p40 = scmp.eq.s32.totalorder %s21, 0
      %p41 = por %p39, %p40
      %p42 = scmp.ne.s32.totalorder %s31, %s34
      %p43 = scmp.eq.s32.totalorder %s26, 1
      %p44 = por %p42, %p43
      %p45 = scmp.ne.s32.totalorder %s34, %s35
      %p46 = scmp.eq.s32.totalorder %s26, 0
      %p47 = por %p45, %p46
      %p48 = scmp.ne.s32.totalorder %s34, %s35
      %p49 = scmp.eq.s32.totalorder %s27, 1
      %p50 = por %p48, %p49
      %p52 = scmp.ne.s32.totalorder %s35, %s51
      %p53 = scmp.eq.s32.totalorder %s27, 0
      %p54 = por %p52, %p53
      %s56 = sadd.s32 %s55, 1
      %p59 = scmp.eq.s32.totalorder %s21, 1
      %p60 = scmp.ne.s32.totalorder %s55, %s57
      %p61 = scmp.eq.s32.totalorder %s21, 0
      %p62 = por %p60, %p61
      %p63 = scmp.ne.s32.totalorder %s55, %s57
      %p64 = scmp.eq.s32.totalorder %s26, 1
      %p65 = por %p63, %p64
      %p66 = scmp.ne.s32.totalorder %s57, %s58
      %p67 = scmp.eq.s32.totalorder %s26, 0
      %p68 = por %p66, %p67
      %p69 = scmp.ne.s32.totalorder %s57, %s58
      %p70 = scmp.eq.s32.totalorder %s27, 1
      %p71 = por %p69, %p70
      %p73 = scmp.ne.s32.totalorder %s58, %s72
      %p74 = scmp.eq.s32.totalorder %s27, 0
      %p75 = por %p73, %p74
      %s77 = sadd.s32 %s76, 1
      %p80 = scmp.eq.s32.totalorder %s21, 1
      %p81 = scmp.ne.s32.totalorder %s76, %s78
      %p82 = scmp.eq.s32.totalorder %s21, 0
      %p83 = por %p81, %p82
      %p84 = scmp.ne.s32.totalorder %s76, %s78
      %p85 = scmp.eq.s32.totalorder %s26, 1
      %p86 = por %p84, %p85
      %p87 = scmp.ne.s32.totalorder %s78, %s79
      %p88 = scmp.eq.s32.totalorder %s26, 0
      %p89 = por %p87, %p88
      %p90 = scmp.ne.s32.totalorder %s78, %s79
      %p91 = scmp.eq.s32.totalorder %s27, 1
      %p92 = por %p90, %p91
      %p94 = scmp.ne.s32.totalorder %s79, %s93
      %p95 = scmp.eq.s32.totalorder %s27, 0
      %p96 = por %p94, %p95
      %s98 = sadd.s32 %s97, 1
      %p101 = scmp.eq.s32.totalorder %s21, 1
      %p102 = scmp.ne.s32.totalorder %s97, %s99
      %p103 = scmp.eq.s32.totalorder %s21, 0
      %p104 = por %p102, %p103
      %p105 = scmp.ne.s32.totalorder %s97, %s99
      %p106 = scmp.eq.s32.totalorder %s26, 1
      %p107 = por %p105, %p106
      %p108 = scmp.ne.s32.totalorder %s99, %s100
      %p109 = scmp.eq.s32.totalorder %s26, 0
      %p110 = por %p108, %p109
      %p111 = scmp.ne.s32.totalorder %s99, %s100
      %p112 = scmp.eq.s32.totalorder %s27, 1
      %p113 = por %p111, %p112
      %p115 = scmp.ne.s32.totalorder %s100, %s114
      %p116 = scmp.eq.s32.totalorder %s27, 0
      %p117 = por %p115, %p116
      %s119 = sadd.s32 %s118, 1
      %p122 = scmp.eq.s32.totalorder %s21, 1
      %p123 = scmp.ne.s32.totalorder %s118, %s120
      %p124 = scmp.eq.s32.totalorder %s21, 0
      %p125 = por %p123, %p124
      %p126 = scmp.ne.s32.totalorder %s118, %s120
      %p127 = scmp.eq.s32.totalorder %s26, 1
      %p128 = por %p126, %p127
      %p129 = scmp.ne.s32.totalorder %s120, %s121
      %p130 = scmp.eq.s32.totalorder %s26, 0
      %p131 = por %p129, %p130
      %p132 = scmp.ne.s32.totalorder %s120, %s121
      %p133 = scmp.eq.s32.totalorder %s27, 1
      %p134 = por %p132, %p133
      %p136 = scmp.ne.s32.totalorder %s121, %s135
      %p137 = scmp.eq.s32.totalorder %s27, 0
      %p138 = por %p136, %p137
      %s140 = sadd.s32 %s139, 1
      %p143 = scmp.eq.s32.totalorder %s21, 1
      %p144 = scmp.ne.s32.totalorder %s139, %s141
      %p145 = scmp.eq.s32.totalorder %s21, 0
      %p146 = por %p144, %p145
      %p147 = scmp.ne.s32.totalorder %s139, %s141
      %p148 = scmp.eq.s32.totalorder %s26, 1
      %p149 = por %p147, %p148
      %p150 = scmp.ne.s32.totalorder %s141, %s142
      %p151 = scmp.eq.s32.totalorder %s26, 0
      %p152 = por %p150, %p151
      %p153 = scmp.ne.s32.totalorder %s141, %s142
      %p154 = scmp.eq.s32.totalorder %s27, 1
      %p155 = por %p153, %p154
      %p157 = scmp.ne.s32.totalorder %s142, %s156
      %p158 = scmp.eq.s32.totalorder %s27, 0
      %p159 = por %p157, %p158
      %s161 = sadd.s32 %s160, 1
      %p164 = scmp.eq.s32.totalorder %s21, 1
      %p165 = scmp.ne.s32.totalorder %s160, %s162
      %p166 = scmp.eq.s32.totalorder %s21, 0
      %p167 = por %p165, %p166
      %p168 = scmp.ne.s32.totalorder %s160, %s162
      %p169 = scmp.eq.s32.totalorder %s26, 1
      %p170 = por %p168, %p169
      %p171 = scmp.ne.s32.totalorder %s162, %s163
      %p172 = scmp.eq.s32.totalorder %s26, 0
      %p173 = por %p171, %p172
      %p174 = scmp.ne.s32.totalorder %s162, %s163
      %p175 = scmp.eq.s32.totalorder %s27, 1
      %p176 = por %p174, %p175
      %p178 = scmp.ne.s32.totalorder %s163, %s177
      %p179 = scmp.eq.s32.totalorder %s27, 0
      %p180 = por %p178, %p179
      %s182 = sadd.s32 %s181, 1
      %p185 = scmp.eq.s32.totalorder %s21, 1
      %p186 = scmp.ne.s32.totalorder %s181, %s183
      %p187 = scmp.eq.s32.totalorder %s21, 0
      %p188 = por %p186, %p187
      %p189 = scmp.ne.s32.totalorder %s181, %s183
      %p190 = scmp.eq.s32.totalorder %s26, 1
      %p191 = por %p189, %p190
      %p192 = scmp.ne.s32.totalorder %s183, %s184
      %p193 = scmp.eq.s32.totalorder %s26, 0
      %p194 = por %p192, %p193
      %p195 = scmp.ne.s32.totalorder %s183, %s184
      %p196 = scmp.eq.s32.totalorder %s27, 1
      %p197 = por %p195, %p196
      %p199 = scmp.ne.s32.totalorder %s184, %s198
      %p200 = scmp.eq.s32.totalorder %s27, 0
      %p201 = por %p199, %p200
      %s203 = sadd.s32 %s202, 1
      %p206 = scmp.eq.s32.totalorder %s21, 1
      %p207 = scmp.ne.s32.totalorder %s202, %s204
      %p208 = scmp.eq.s32.totalorder %s21, 0
      %p209 = por %p207, %p208
      %p210 = scmp.ne.s32.totalorder %s202, %s204
      %p211 = scmp.eq.s32.totalorder %s26, 1
      %p212 = por %p210, %p211
      %p213 = scmp.ne.s32.totalorder %s204, %s205
      %p214 = scmp.eq.s32.totalorder %s26, 0
      %p215 = por %p213, %p214
      %p216 = scmp.ne.s32.totalorder %s204, %s205
      %p217 = scmp.eq.s32.totalorder %s27, 1
      %p218 = por %p216, %p217
      %p220 = scmp.ne.s32.totalorder %s205, %s219
      %p221 = scmp.eq.s32.totalorder %s27, 0
      %p222 = por %p220, %p221
      %s224 = sadd.s32 %s223, 1
      %p227 = scmp.eq.s32.totalorder %s21, 1
      %p228 = scmp.ne.s32.totalorder %s223, %s225
      %p229 = scmp.eq.s32.totalorder %s21, 0
      %p230 = por %p228, %p229
      %p231 = scmp.ne.s32.totalorder %s223, %s225
      %p232 = scmp.eq.s32.totalorder %s26, 1
      %p233 = por %p231, %p232
      %p234 = scmp.ne.s32.totalorder %s225, %s226
      %p235 = scmp.eq.s32.totalorder %s26, 0
      %p236 = por %p234, %p235
      %p237 = scmp.ne.s32.totalorder %s225, %s226
      %p238 = scmp.eq.s32.totalorder %s27, 1
      %p239 = por %p237, %p238
      %p241 = scmp.ne.s32.totalorder %s226, %s240
      %p242 = scmp.eq.s32.totalorder %s27, 0
      %p243 = por %p241, %p242
      %s244 = ssub.s32 %s21, %s28
      %p245 = scmp.eq.s32.totalorder %s244, 0
      %s247 = sadd.s32 %s246, 1
      %s248 = scalar_select %p245, %s246, %s247
      %p251 = pneg %p245
      %p252 = scmp.eq.s32.totalorder %s21, 1
      %p253 = por %p251, %p252
      %p254 = scmp.ne.s32.totalorder %s246, %s249
      %p255 = scmp.eq.s32.totalorder %s21, 0
      %p256 = por %p254, %p255
      %p257 = scmp.ne.s32.totalorder %s246, %s249
      %p258 = scmp.eq.s32.totalorder %s26, 1
      %p259 = por %p257, %p258
      %p260 = scmp.ne.s32.totalorder %s249, %s250
      %p261 = scmp.eq.s32.totalorder %s26, 0
      %p262 = por %p260, %p261
      %p263 = scmp.ne.s32.totalorder %s249, %s250
      %p264 = scmp.eq.s32.totalorder %s27, 1
      %p265 = por %p263, %p264
      %p267 = scmp.ne.s32.totalorder %s250, %s266
      %p268 = scmp.eq.s32.totalorder %s27, 0
      %p269 = por %p267, %p268
      %p270 = scmp.le.s32.totalorder 1, %s21
      %p271 = scmp.lt.s32.totalorder %s21, 3
      %p272 = pnand %p270, %p271
      %p273 = pneg %p272
      // Predicated region
      $region9: #{tpu_custom_call.1} parent=5 // pred_check
        _
      $region10: #{tpu_custom_call.1} parent=5 // pred_check_branch
        %275 = sbr.rel (%p272) target = $region12
      $region11: #{tpu_custom_call.1} parent=5 // pred_region
        %s276 = ssub.s32 %s21, 1
        // Predicated region
        $region13: #{tpu_custom_call.1} parent=11 // pred_check
          %p277 = pneg %p68
        $region14: #{tpu_custom_call.1} parent=11 // pred_check_branch
          %279 = sbr.rel (%p277) target = $region16
        $region15: #{tpu_custom_call.1} parent=11 // pred_region
          _
        $region16: #{tpu_custom_call.1} parent=11 // pred_fallthru
          _
        // Predicated region
        $region17: #{tpu_custom_call.1} parent=11 // pred_check
          %p280 = pneg %p89
        $region18: #{tpu_custom_call.1} parent=11 // pred_check_branch
          %282 = sbr.rel (%p280) target = $region20
        $region19: #{tpu_custom_call.1} parent=11 // pred_region
          _
        $region20: #{tpu_custom_call.1} parent=11 // pred_fallthru
          _
        // Predicated region
        $region21: #{tpu_custom_call.1} parent=11 // pred_check
          %p283 = pneg %p110
        $region22: #{tpu_custom_call.1} parent=11 // pred_check_branch
          %285 = sbr.rel (%p283) target = $region24
        $region23: #{tpu_custom_call.1} parent=11 // pred_region
          _
        $region24: #{tpu_custom_call.1} parent=11 // pred_fallthru
          _
        // Predicated region
        $region25: #{tpu_custom_call.1} parent=11 // pred_check
          %p286 = pneg %p131
        $region26: #{tpu_custom_call.1} parent=11 // pred_check_branch
          %288 = sbr.rel (%p286) target = $region28
        $region27: #{tpu_custom_call.1} parent=11 // pred_region
          _
        $region28: #{tpu_custom_call.1} parent=11 // pred_fallthru
          _
        // Predicated region
        $region29: #{tpu_custom_call.1} parent=11 // pred_check
          %p289 = pneg %p152
        $region30: #{tpu_custom_call.1} parent=11 // pred_check_branch
          %291 = sbr.rel (%p289) target = $region32
        $region31: #{tpu_custom_call.1} parent=11 // pred_region
          _
        $region32: #{tpu_custom_call.1} parent=11 // pred_fallthru
          _
        // Predicated region
        $region33: #{tpu_custom_call.1} parent=11 // pred_check
          %p292 = pneg %p173
        $region34: #{tpu_custom_call.1} parent=11 // pred_check_branch
          %294 = sbr.rel (%p292) target = $region36
        $region35: #{tpu_custom_call.1} parent=11 // pred_region
          _
        $region36: #{tpu_custom_call.1} parent=11 // pred_fallthru
          _
        // Predicated region
        $region37: #{tpu_custom_call.1} parent=11 // pred_check
          %p295 = pneg %p194
        $region38: #{tpu_custom_call.1} parent=11 // pred_check_branch
          %297 = sbr.rel (%p295) target = $region40
        $region39: #{tpu_custom_call.1} parent=11 // pred_region
          _
        $region40: #{tpu_custom_call.1} parent=11 // pred_fallthru
          _
        // Predicated region
        $region41: #{tpu_custom_call.1} parent=11 // pred_check
          %p298 = pneg %p215
        $region42: #{tpu_custom_call.1} parent=11 // pred_check_branch
          %300 = sbr.rel (%p298) target = $region44
        $region43: #{tpu_custom_call.1} parent=11 // pred_region
          _
        $region44: #{tpu_custom_call.1} parent=11 // pred_fallthru
          _
        // Predicated region
        $region45: #{tpu_custom_call.1} parent=11 // pred_check
          %p301 = pneg %p236
        $region46: #{tpu_custom_call.1} parent=11 // pred_check_branch
          %303 = sbr.rel (%p301) target = $region48
        $region47: #{tpu_custom_call.1} parent=11 // pred_region
          _
        $region48: #{tpu_custom_call.1} parent=11 // pred_fallthru
          _
      $region12: #{tpu_custom_call.1} parent=5 // pred_fallthru
        _
      %p304 = scmp.lt.s32.totalorder %s21, 2
      // Predicated region
      $region49: #{tpu_custom_call.1} parent=5 // pred_check
        %p305 = pneg %p304
      $region50: #{tpu_custom_call.1} parent=5 // pred_check_branch
        %307 = sbr.rel (%p305) target = $region52
      $region51: #{tpu_custom_call.1} parent=5 // pred_region
        // Predicated region
        $region53: #{tpu_custom_call.1} parent=51 // pred_check
          %p308 = pneg %p41
        $region54: #{tpu_custom_call.1} parent=51 // pred_check_branch
          %310 = sbr.rel (%p308) target = $region56
        $region55: #{tpu_custom_call.1} parent=51 // pred_region
          %s311 = smul.u32 2, %s21
          %p312 = scmp.lt.s32.totalorder %s311, 3
          %s313 = scalar_select %p312, %s311, 3
          %s314 = smul.addr %s313, 4
          %s315 = scalar_lea.vmem %s0, %s314
          %s316 = smul.u32 2, %s21
        $region56: #{tpu_custom_call.1} parent=51 // pred_fallthru
          _
      $region52: #{tpu_custom_call.1} parent=5 // pred_fallthru
        _
      %p317 = scmp.le.s32.totalorder 1, %s21
      %p318 = scmp.lt.s32.totalorder %s21, 3
      %p319 = pnand %p317, %p318
      %p320 = pneg %p319
      // Predicated region
      $region57: #{tpu_custom_call.1} parent=5 // pred_check
        _
      $region58: #{tpu_custom_call.1} parent=5 // pred_check_branch
        %322 = sbr.rel (%p319) target = $region60
      $region59: #{tpu_custom_call.1} parent=5 // pred_region
        %s323 = ssub.s32 %s21, 1
        %s324 = smul.u32 2, %s26
        %p325 = scmp.lt.s32.totalorder %s324, 3
        %s326 = scalar_select %p325, %s324, 3
        %s327 = smul.addr %s326, 4
        %s328 = scalar_lea.vmem %s0, %s327
        %p329 = pneg %p47
        %p330 = pneg %p44
        %p331 = pneg %p68
        %p332 = pneg %p65
        %p333 = pneg %p89
        %p334 = pneg %p86
        %p335 = pneg %p110
        %p336 = pneg %p107
        %p337 = pneg %p131
        %p338 = pneg %p128
        %p339 = pneg %p152
        %p340 = pneg %p149
        %p341 = pneg %p173
        %p342 = pneg %p170
        %p343 = pneg %p194
        %p344 = pneg %p191
        %p345 = pneg %p215
        %p346 = pneg %p212
        %p347 = pneg %p236
        %p348 = pneg %p233
        %p349 = pneg %p262
        %p350 = pneg %p259
        %s351 = sand.u32 %s249, 1
        %s352 = scalar_lea.sflag [#allocation4], %s351
        %s353 = sand.u32 %s249, 1
        %s354 = smul.addr %s353, 12
        %s355 = scalar_lea.vmem [#allocation3], %s354
        %s356 = smul.u32 2, %s26
        %p357 = scmp.lt.s32.totalorder %s356, 3
        %s358 = scalar_select %p357, %s356, 3
        %s359 = smul.addr %s358, 4
        %s360 = scalar_lea.vmem %s0, %s359
        %s361 = smul.u32 2, %s26
        %s362 = smul.u32 3, %s26
        %v364 = vlaneseq
        %v365 = vand.u32 %v364, 127
        %v366 = vshra.s32 %v365, 3
        %v367 = vand.u32 %v365, 7
        %vm368 = vcmp.ge.s32.totalorder %v366, 1
        %vm369 = vcmp.le.s32.totalorder %v366, 6
        %vm370 = vcmp.ge.s32.totalorder %v367, 1
        %vm371 = vcmp.le.s32.totalorder %v367, 6
        %vm372 = vmand %vm368, %vm370
        %vm373 = vmand %vm368, %vm371
        %vm374 = vmand %vm369, %vm370
        %vm375 = vmand %vm369, %vm371
        %v376 = vld [vmem:[%s1] sm:$0xff]
        %v377 = vld [vmem:[%s1 + $0x8] sm:$0xff]
        %v378 = vld [vmem:[%s2] sm:$0xff]
        %v379 = vld [vmem:[%s2 + $0x8] sm:$0xff]
        %v380 = vld [vmem:[%s3] sm:$0xf]
        %v381 = vld [vmem:[%s3 + $0x4] sm:$0xf]
        %v382 = vld [vmem:[%s3 + $0x8] sm:$0xf]
        %v383 = vld [vmem:[%s3 + $0xc] sm:$0xf]
        %v384 = vld [vmem:[%s4] sm:$0xff]
        %v385 = vld [vmem:[%s4 + $0x8] sm:$0xff]
        %v386 = vld [vmem:[%s4 + $0x10] sm:$0xff]
        %v387 = vld [vmem:[%s4 + $0x18] sm:$0xff]
        %v388 = vld [vmem:[%s5] sm:$0xf]
        %v389 = vld [vmem:[%s5 + $0x4] sm:$0xf]
        %v390 = vld [vmem:[%s5 + $0x8] sm:$0xf]
        %v391 = vld [vmem:[%s5 + $0xc] sm:$0xf]
        %v392 = vld [vmem:[%s5 + $0x10] sm:$0xf]
        %v393 = vld [vmem:[%s5 + $0x14] sm:$0xf]
        %v394 = vld [vmem:[%s5 + $0x18] sm:$0xf]
        %v395 = vld [vmem:[%s5 + $0x1c] sm:$0xf]
        %v396 = vld [vmem:[%s5 + $0x20] sm:$0xf]
        %v397 = vld [vmem:[%s6] sm:$0xff]
        %v398 = vld [vmem:[#allocation2] sm:$0x1]
        %v399 = vld [vmem:[%s8] sm:$0xff]
        %v400 = vld [vmem:[%s9] sm:$0xff]
        %v401 = vld [vmem:[%s360] sm:$0xf]
        %v402 = vld [vmem:[%s360 + $0x4] sm:$0xf]
        %v403 = vunpack.c.l.bf16 %v401
        %v404 = vunpack.c.l.bf16 %v402
        %406 = vset.pattern.permute.xlu0 0
        %407 = vperm.xlu0 %406, %v376
        %v408 = vpop.permute.xlu0 %407
        %411 = vset.pattern.permute.xlu0 0
        %412 = vperm.xlu0 %411, %v377
        %v413 = vpop.permute.xlu0 %412
        %v415 = vmul.f32 %v403, %v408
        %v416 = vmul.f32 %v404, %v413
        %418 = vset.pattern.permute.xlu0 0
        %419 = vperm.xlu0 %418, %v378
        %v420 = vpop.permute.xlu0 %419
        %423 = vset.pattern.permute.xlu0 0
        %424 = vperm.xlu0 %423, %v379
        %v425 = vpop.permute.xlu0 %424
        %v427 = vadd.f32 %v415, %v420
        %v428 = vadd.f32 %v416, %v425
        %v429 = vmul.f32 %v427, 1.442695
        %v430 = vpow.pop %v429
        %v431 = vmul.f32 %v428, 1.442695
        %v432 = vpow.pop %v431
        %v433 = vadd.f32 %v430, 2.0
        %v434 = vadd.f32 %v432, 2.0
        %v435 = vmul.f32 %v430, %v433
        %v436 = vmul.f32 %v432, %v434
        %v437 = vadd.f32 %v435, 2.0
        %v438 = vadd.f32 %v436, 2.0
        %v439 = vrcp.pop %v437
        %v440 = vrcp.pop %v438
        %v441 = vmul.f32 %v435, %v439
        %v442 = vmul.f32 %v436, %v440
        %vm443 = vcmp.gt.f32.partialorder %v427, 20.0
        %vm444 = vcmp.gt.f32.partialorder %v428, 20.0
        %v445 = vsel %vm443, 1.0, %v441
        %v446 = vsel %vm444, 1.0, %v442
        %v447 = vmul.f32 %v427, %v445
        %v448 = vmul.f32 %v428, %v446
        %v449 = vpack.c.bf16 %v448, %v447
        %451 = vset.pattern.permute.xlu0 0
        %452 = vperm.xlu0 %451, %v384
        %v453 = vpop.permute.xlu0 %452
        %456 = vset.pattern.permute.xlu0 0
        %457 = vperm.xlu0 %456, %v385
        %v458 = vpop.permute.xlu0 %457
        %461 = vset.pattern.permute.xlu0 0
        %462 = vperm.xlu0 %461, %v386
        %v463 = vpop.permute.xlu0 %462
        %466 = vset.pattern.permute.xlu0 0
        %467 = vperm.xlu0 %466, %v387
        %v468 = vpop.permute.xlu0 %467
        %v474 = vunpack.c.l.b16 %v380
        %v475 = vunpack.c.l.b16 %v381
        %v476 = vunpack.c.l.b16 %v382
        %v477 = vunpack.c.l.b16 %v383
        %v478 = vpack.c.b16 %v475, %v474
        %v479 = vpack.c.b16 %v477, %v476
        %vm480 = vcmask 130048
        %v482 = vsel %vm480, %v478, 0
        %v485 = vsel %vm480, %v479, 0
        %487 = vmatpush.bf16.msra.mxu0 0
        %488 = vmatpush.bf16.msra.mxu0 0
        %489 = vmatpush.bf16.msra.mxu0 0
        %490 = vmatpush.bf16.msra.mxu0 0
        %491 = vmatpush.bf16.msra.mxu0 0
        %492 = vmatpush.bf16.msra.mxu0 0
        %493 = vmatpush.bf16.msra.mxu0 0
        %494 = vmatpush.bf16.msra.mxu0 %v449
        %495 = vmatmul.bf16.gmra.mxu0 %v482
        %v496 = vpop.f32.mrf.mxu0
        %v497 = vadd.f32 %v453, %v496
        %v498 = vpop.f32.mrf.mxu0
        %v499 = vadd.f32 %v458, %v498
        %500 = vmatmul.bf16.gmra.mxu0 %v485
        %v501 = vpop.f32.mrf.mxu0
        %v502 = vadd.f32 %v463, %v501
        %v503 = vpop.f32.mrf.mxu0
        %v504 = vadd.f32 %v468, %v503
        %505 = vdwg.mxu0
        %v506 = vmul.f32 %v497, 1.442695
        %v507 = vpow.pop %v506
        %v508 = vmul.f32 %v499, 1.442695
        %v509 = vpow.pop %v508
        %v510 = vmul.f32 %v502, 1.442695
        %v511 = vpow.pop %v510
        %v512 = vmul.f32 %v504, 1.442695
        %v513 = vpow.pop %v512
        %v514 = vadd.f32 %v507, 2.0
        %v515 = vadd.f32 %v509, 2.0
        %v516 = vadd.f32 %v511, 2.0
        %v517 = vadd.f32 %v513, 2.0
        %v518 = vmul.f32 %v507, %v514
        %v519 = vmul.f32 %v509, %v515
        %v520 = vmul.f32 %v511, %v516
        %v521 = vmul.f32 %v513, %v517
        %v522 = vadd.f32 %v518, 2.0
        %v523 = vadd.f32 %v519, 2.0
        %v524 = vadd.f32 %v520, 2.0
        %v525 = vadd.f32 %v521, 2.0
        %v526 = vrcp.pop %v522
        %v527 = vrcp.pop %v523
        %v528 = vrcp.pop %v524
        %v529 = vrcp.pop %v525
        %v530 = vmul.f32 %v518, %v526
        %v531 = vmul.f32 %v519, %v527
        %v532 = vmul.f32 %v520, %v528
        %v533 = vmul.f32 %v521, %v529
        %vm534 = vcmp.gt.f32.partialorder %v497, 20.0
        %vm535 = vcmp.gt.f32.partialorder %v499, 20.0
        %vm536 = vcmp.gt.f32.partialorder %v502, 20.0
        %vm537 = vcmp.gt.f32.partialorder %v504, 20.0
        %v538 = vsel %vm534, 1.0, %v530
        %v539 = vsel %vm535, 1.0, %v531
        %v540 = vsel %vm536, 1.0, %v532
        %v541 = vsel %vm537, 1.0, %v533
        %v542 = vmul.f32 %v497, %v538
        %v543 = vmul.f32 %v499, %v539
        %v544 = vmul.f32 %v502, %v540
        %v545 = vmul.f32 %v504, %v541
        %v546 = vpack.c.bf16 %v543, %v542
        %v547 = vpack.c.bf16 %v545, %v544
        %v557 = vunpack.c.l.b16 %v388
        %v558 = vunpack.c.l.b16 %v389
        %v559 = vunpack.c.l.b16 %v390
        %v560 = vunpack.c.l.b16 %v391
        %v561 = vunpack.c.l.b16 %v392
        %v562 = vunpack.c.l.b16 %v393
        %v563 = vunpack.c.l.b16 %v394
        %v564 = vunpack.c.l.b16 %v395
        %v565 = vunpack.c.l.b16 %v396
        %v566 = vpack.c.b16 %v558, %v557
        %v567 = vpack.c.b16 %v560, %v559
        %v568 = vpack.c.b16 %v562, %v561
        %v569 = vpack.c.b16 %v564, %v563
        %v570 = vpack.c.b16 %v565, %v565
        %vm571 = vcmask 261120
        %v573 = vsel %vm571, %v566, 0
        %v576 = vsel %vm571, %v567, 0
        %v579 = vsel %vm571, %v568, 0
        %v582 = vsel %vm571, %v569, 0
        %v585 = vsel %vm571, %v570, 0
        %587 = vmatpush.bf16.msra.mxu0 0
        %588 = vmatpush.bf16.msra.mxu0 0
        %589 = vmatpush.bf16.msra.mxu0 0
        %590 = vmatpush.bf16.msra.mxu0 0
        %591 = vmatpush.bf16.msra.mxu0 0
        %592 = vmatpush.bf16.msra.mxu0 0
        %593 = vmatpush.bf16.msra.mxu0 %v547
        %594 = vmatpush.bf16.msra.mxu0 %v546
        %595 = vmatmul.bf16.gmra.mxu0 %v573
        %v596 = vpop.f32.mrf.mxu0
        %v597 = vadd.f32 0.0, %v596
        %v598 = vpop.f32.mrf.mxu0
        %v599 = vadd.f32 0.0, %v598
        %600 = vmatmul.bf16.gmra.mxu0 %v576
        %v601 = vpop.f32.mrf.mxu0
        %v602 = vadd.f32 0.0, %v601
        %v603 = vpop.f32.mrf.mxu0
        %v604 = vadd.f32 0.0, %v603
        %605 = vmatmul.bf16.gmra.mxu0 %v579
        %v606 = vpop.f32.mrf.mxu0
        %v607 = vadd.f32 0.0, %v606
        %v608 = vpop.f32.mrf.mxu0
        %v609 = vadd.f32 0.0, %v608
        %610 = vmatmul.bf16.gmra.mxu0 %v582
        %v611 = vpop.f32.mrf.mxu0
        %v612 = vadd.f32 0.0, %v611
        %v613 = vpop.f32.mrf.mxu0
        %v614 = vadd.f32 0.0, %v613
        %615 = vmatmul.bf16.gmra.mxu0 %v585
        %v616 = vpop.f32.mrf.mxu0
        %v617 = vadd.f32 0.0, %v616
        %v618 = vpop.f32.mrf.mxu0
        %619 = vdwg.mxu0
        %621 = vrot.lane.b32.xlu0 %v597, 73
        %v622 = vpop.permute.xlu0 %621
        %624 = vrot.lane.b32.xlu0 %v597, 9
        %v625 = vpop.permute.xlu0 %624
        %vm627 = vcmask 72704
        %v628 = vsel %vm627, %v622, %v625
        %v629 = vsel %vm372, 1, 0
        %vm630 = vcmp.eq.s32.totalorder %v629, 1
        %v631 = vsel %vm630, %v628, 0.0
        %v632 = vadd.f32 %v631, 0.0
        %634 = vrot.lane.b32.xlu0 %v599, 72
        %v635 = vpop.permute.xlu0 %634
        %637 = vrot.lane.b32.xlu0 %v599, 8
        %v638 = vpop.permute.xlu0 %637
        %vm640 = vcmask 64512
        %v641 = vsel %vm640, %v635, %v638
        %v642 = vsel %vm368, 1, 0
        %vm643 = vcmp.eq.s32.totalorder %v642, 1
        %v644 = vsel %vm643, %v641, 0.0
        %v645 = vadd.f32 %v632, %v644
        %647 = vrot.lane.b32.xlu0 %v602, 71
        %v648 = vpop.permute.xlu0 %647
        %650 = vrot.lane.b32.xlu0 %v602, 7
        %v651 = vpop.permute.xlu0 %650
        %vm653 = vcmask 56320
        %v654 = vsel %vm653, %v648, %v651
        %v655 = vsel %vm373, 1, 0
        %vm656 = vcmp.eq.s32.totalorder %v655, 1
        %v657 = vsel %vm656, %v654, 0.0
        %v658 = vadd.f32 %v645, %v657
        %660 = vrot.lane.b32.xlu0 %v604, 65
        %v661 = vpop.permute.xlu0 %660
        %663 = vrot.lane.b32.xlu0 %v604, 1
        %v664 = vpop.permute.xlu0 %663
        %vm666 = vcmask 7168
        %v667 = vsel %vm666, %v661, %v664
        %v668 = vsel %vm370, 1, 0
        %vm669 = vcmp.eq.s32.totalorder %v668, 1
        %v670 = vsel %vm669, %v667, 0.0
        %v671 = vadd.f32 %v658, %v670
        %v672 = vadd.f32 %v671, %v607
        %674 = vrot.lane.b32.xlu0 %v609, 127
        %v675 = vpop.permute.xlu0 %674
        %677 = vrot.lane.b32.xlu0 %v609, 63
        %v678 = vpop.permute.xlu0 %677
        %vm680 = vcmask 515072
        %v681 = vsel %vm680, %v675, %v678
        %v682 = vsel %vm371, 1, 0
        %vm683 = vcmp.eq.s32.totalorder %v682, 1
        %v684 = vsel %vm683, %v681, 0.0
        %v685 = vadd.f32 %v672, %v684
        %687 = vrot.lane.b32.xlu0 %v612, 121
        %v688 = vpop.permute.xlu0 %687
        %690 = vrot.lane.b32.xlu0 %v612, 57
        %v691 = vpop.permute.xlu0 %690
        %vm693 = vcmask 465920
        %v694 = vsel %vm693, %v688, %v691
        %v695 = vsel %vm374, 1, 0
        %vm696 = vcmp.eq.s32.totalorder %v695, 1
        %v697 = vsel %vm696, %v694, 0.0
        %v698 = vadd.f32 %v685, %v697
        %700 = vrot.lane.b32.xlu0 %v614, 120
        %v701 = vpop.permute.xlu0 %700
        %703 = vrot.lane.b32.xlu0 %v614, 56
        %v704 = vpop.permute.xlu0 %703
        %vm706 = vcmask 457728
        %v707 = vsel %vm706, %v701, %v704
        %v708 = vsel %vm369, 1, 0
        %vm709 = vcmp.eq.s32.totalorder %v708, 1
        %v710 = vsel %vm709, %v707, 0.0
        %v711 = vadd.f32 %v698, %v710
        %713 = vrot.lane.b32.xlu0 %v617, 119
        %v714 = vpop.permute.xlu0 %713
        %716 = vrot.lane.b32.xlu0 %v617, 55
        %v717 = vpop.permute.xlu0 %716
        %vm719 = vcmask 449536
        %v720 = vsel %vm719, %v714, %v717
        %v721 = vsel %vm375, 1, 0
        %vm722 = vcmp.eq.s32.totalorder %v721, 1
        %v723 = vsel %vm722, %v720, 0.0
        %v724 = vadd.f32 %v711, %v723
        %vm725 = vcmask 523264
        %v726 = vsel %vm725, %v724, 0.0
        %727 = vadd.xlane.f32.xlu0 %v726
        %v728 = vpop.xlane.xlu0 %727
        %v729 = vrcp.pop 64.0
        %v730 = vmul.f32 64.0, %v729
        %v731 = vsub.f32 1.0, %v730
        %v732 = vmul.f32 %v729, %v731
        %v733 = vadd.f32 %v729, %v732
        %vm734 = vweird.f32 %v729
        %v735 = vsel %vm734, %v729, %v733
        %v736 = vmul.f32 %v728, %v735
        %v737 = vmul.f32 %v397, %v736
        %v738 = vsel %vm666, %v737, 0.0
        %v739 = vrot.slane %v738, 4
        %v740 = vadd.f32 %v738, %v739
        %v741 = vrot.slane %v740, 2
        %v742 = vadd.f32 %v740, %v741
        %v743 = vrot.slane %v742, 1
        %v744 = vadd.f32 %v742, %v743
        %v745 = vadd.f32 %v744, %v398
        %v746 = vmax.f32 %v745, 0.0
        %v747 = vperm.slane %v746, 0
        %v748 = vmul.f32 %v399, %v747
        %v749 = vadd.f32 %v748, 0.0
        %v750 = vadd.f32 %v749, %v400
        %v751 = vxor.u32 %v750, 2147483648
        %v752 = vmul.f32 %v751, 1.442695
        %v753 = vpow.pop %v752
        %v754 = vadd.f32 %v753, 1.0
        %v755 = vrcp.pop %v754
        %v756 = vmul.f32 %v754, %v755
        %v757 = vsub.f32 1.0, %v756
        %v758 = vmul.f32 %v755, %v757
        %v759 = vadd.f32 %v755, %v758
        %vm760 = vweird.f32 %v754
        %vm761 = vweird.f32 %v755
        %vm762 = vmor %vm760, %vm761
        %v763 = vsel %vm762, %v755, %v759
        %v764 = vand.u32 2147483647, %v754
        %vm765 = vcmp.eq.f32.partialorder %v764, 8.507059e+37
        %v766 = vand.u32 %v754, 2147483648
        %v767 = vor.u32 1.1754944e-38, %v766
        %v768 = vsel %vm765, %v767, %v763
        %v769 = vmul.f32 1.0, %v768
        %771 = vset.pattern.permute.xlu0 0
        %772 = vperm.xlu0 %771, %v769
        %v773 = vpop.permute.xlu0 %772
        %v775 = vmul.f32 %v724, %v773
        %v776 = vpack.c.bf16 %v775, %v775
        %v779 = vunpack.c.l.b16 %v401
        %v780 = vunpack.c.l.b16 %v402
        %v782 = vunpack.c.l.b16 %v776
        %v783 = vpack.c.b16 %v779, %v779
        %v784 = vpack.c.b16 %v780, %v780
        %v785 = vpack.c.b16 %v782, %v782
        %vm789 = vcmask 519168
        %790 = vst.msk [vmem:[%s355] sm:$0xf] %vm789, %v783
        %791 = vst.msk [vmem:[%s355 + $0x4] sm:$0xf] %vm789, %v784
        %792 = vst.msk [vmem:[%s355 + $0x8] sm:$0xf] %vm789, %v785
        %s793 = sand.u32 %s249, 1
        %s794 = scalar_lea.sflag [#allocation4], %s793
        %s795 = sand.u32 %s249, 1
        %s796 = smul.addr %s795, 12
        %s797 = scalar_lea.vmem [#allocation3], %s796
        // Predicated region
        $region61: #{tpu_custom_call.1} parent=59 // pred_check
          %p798 = pneg %p259
        $region62: #{tpu_custom_call.1} parent=59 // pred_check_branch
          %800 = sbr.rel (%p798) target = $region64
        $region63: #{tpu_custom_call.1} parent=59 // pred_region
          %s801 = smul.u32 3, %s26
          %803 = vsyncadd %s794, 0
          %s804 = smul.addr %s801, 4
          %s805 = scalar_lea.hbm %s10, %s804
          %s806 = sshll.u32 %s797, 4
          %s807 = int_to_ptr.vmem [resolvable:$true] %s806
          %s808 = sshll.u32 %s805, 4
          %s809 = int_to_ptr.hbm [resolvable:$true] %s808
          %814 = dma.vmem_to_hbm [thread:$0]  %s807, 192, %s809, %s794, 64, 64, 4
        $region64: #{tpu_custom_call.1} parent=59 // pred_fallthru
          _
      $region60: #{tpu_custom_call.1} parent=5 // pred_fallthru
        _
      %p815 = scmp.le.s32.totalorder 2, %s21
      // Predicated region
      $region65: #{tpu_custom_call.1} parent=5 // pred_check
        %p816 = pneg %p815
      $region66: #{tpu_custom_call.1} parent=5 // pred_check_branch
        %818 = sbr.rel (%p816) target = $region68
      $region67: #{tpu_custom_call.1} parent=5 // pred_region
        %s819 = ssub.s32 %s21, 2
        // Predicated region
        $region69: #{tpu_custom_call.1} parent=67 // pred_check
          %p820 = pneg %p265
        $region70: #{tpu_custom_call.1} parent=67 // pred_check_branch
          %822 = sbr.rel (%p820) target = $region72
        $region71: #{tpu_custom_call.1} parent=67 // pred_region
          %s823 = sand.u32 %s250, 1
          %s824 = scalar_lea.sflag [#allocation4], %s823
          %s825 = sand.u32 %s250, 1
          %s826 = smul.addr %s825, 12
          %s827 = scalar_lea.vmem [#allocation3], %s826
          %829 = dma.done %s824, 192
        $region72: #{tpu_custom_call.1} parent=67 // pred_fallthru
          _
      $region68: #{tpu_custom_call.1} parent=5 // pred_fallthru
        _
    $region6: #{tpu_custom_call.1} parent=1 // loop_footer
      %s25 = sadd.s32 1, %s21
    $region7: #{tpu_custom_call.1} parent=1 // loop_footer_branch
      %20 = sbr.rel target = $region3
    $region8: #{tpu_custom_call.1} parent=1 // loop_exit
      _
    %830 = vsyncpa [#allocation4], 1
    %s831 = scalar_lea.sflag [#allocation4], 1
    %832 = vsyncpa %s831, 1

</llo_original>
